<compile_context>
chip_gen: v6e
topology: v6e:2x2x1
jax: 0.10.0
libtpu: 0.0.40
codegen_flags: <defaults>
</compile_context>

<pallas_src>
import jax
import jax.numpy as jnp
from jax.experimental import pallas as pl
from jax.experimental.pallas import tpu as pltpu


def _pick_class_block(n_cls, l_suf, seq, d, itemsize):
    """Choose the per-grid-step class batch (bc) and whether padding is needed."""
    vmem_budget = 12 * 1024 * 1024                      # fits every chip's scoped default
    per_cls = 2 * (1 + l_suf + seq) * d * itemsize      # double-buffered in + out
    cap = max(1, min(n_cls, vmem_budget // max(per_cls, 1), 128))
    if n_cls >= 2:
        # Keep at least 2 grid steps so both v7x TensorCores get a share of
        # the "parallel" class axis (no effect on single-TC v5e / v6e).
        cap = min(cap, pl.cdiv(n_cls, 2))
    # Prefer the largest bc <= cap that divides n_cls (avoids wrapper padding).
    best_div = 1
    for bc in range(cap, 0, -1):
        if n_cls % bc == 0:
            best_div = bc
            break
    if best_div * 2 >= cap:
        return best_div, False
    return cap, True


def build_prompts(prefix_content, suffix_content, prefix_style, suffix_style,
                  ctx, *, n_ctx, style_position=1, class_block=None):
    """Pallas implementation of PromptLearner.forward().

    Args:
      prefix_content: (n_cls, 1, D)      -- SOS embedding per class prompt
      suffix_content: (n_cls, L_suf, D)  -- class name + EOS + pad embeddings
      prefix_style:   (1, 1, D)
      suffix_style:   (1, L_suf, D)
      ctx:            (n_ctx, D)         -- learned generic context
    Returns:
      prompts_style:   (1, 1 + n_ctx + L_suf, D)
      prompts_content: (n_cls, 1 + n_ctx + L_suf, D)
    """
    n_cls, _, d = prefix_content.shape
    l_suf = suffix_content.shape[1]
    seq = 1 + n_ctx + l_suf
    dtype = prefix_content.dtype

    assert n_ctx >= 1, "kernel assumes at least one context token"
    assert 0 <= style_position <= l_suf
    assert suffix_content.dtype == dtype and ctx.dtype == dtype
    itemsize = jnp.dtype(dtype).itemsize

    # ---------------- pick the class-batch size BC --------------------------
    if class_block is None:
        bc, need_pad = _pick_class_block(n_cls, l_suf, seq, d, itemsize)
    else:
        bc, need_pad = class_block, (n_cls % class_block != 0)

    nb = pl.cdiv(n_cls, bc)
    n_pad = nb * bc
    if need_pad and n_pad != n_cls:
        pad = ((0, n_pad - n_cls), (0, 0), (0, 0))
        prefix_content = jnp.pad(prefix_content, pad)
        suffix_content = jnp.pad(suffix_content, pad)

    # ---------------- content prompts: batched, single full-tile store ------
    def content_kernel(pref_ref, suf_ref, ctx_ref, out_ref):
        # pref_ref: (bc, 1, D); suf_ref: (bc, l_suf, D); ctx_ref: (n_ctx, D)
        # out_ref : (bc, seq, D)
        suf = suf_ref[...]
        ctx_b = jnp.broadcast_to(ctx_ref[...][None, :, :], (bc, n_ctx, d))
        parts = [pref_ref[...]]
        if style_position > 0:                       # class token(s)
            parts.append(suf[:, :style_position, :])
        parts.append(ctx_b)                          # learned context
        if style_position < l_suf:                   # rest of suffix (EOS/pad)
            parts.append(suf[:, style_position:, :])
        # One unmasked full-block store instead of 4 masked partial stores.
        out_ref[...] = jnp.concatenate(parts, axis=1)

    prompts_content = pl.pallas_call(
        content_kernel,
        out_shape=jax.ShapeDtypeStruct((n_pad, seq, d), dtype),
        grid_spec=pltpu.PrefetchScalarGridSpec(
            num_scalar_prefetch=0,
            grid=(nb,),
            in_specs=[
                pl.BlockSpec((bc, 1, d), lambda i: (i, 0, 0)),
                pl.BlockSpec((bc, l_suf, d), lambda i: (i, 0, 0)),
                # Constant index_map -> ctx stays resident in VMEM (one DMA).
                pl.BlockSpec((n_ctx, d), lambda i: (0, 0)),
            ],
            out_specs=pl.BlockSpec((bc, seq, d), lambda i: (i, 0, 0)),
        ),
        compiler_params=pltpu.CompilerParams(
            dimension_semantics=("parallel",),
            vmem_limit_bytes=32 * 1024 * 1024),
    )(prefix_content, suffix_content, ctx)

    if n_pad != n_cls:
        prompts_content = prompts_content[:n_cls]

    # ---------------- style prompt: tiny, assembled in the wrapper ----------
    # A dedicated pallas_call costs far more (launch + pipeline prologue) than
    # this few-KB concat; XLA emits a roofline copy for it directly.
    prompts_style = jnp.concatenate(
        [prefix_style[0], ctx, suffix_style[0]], axis=0)[None, :, :]

    return prompts_style, prompts_content


def reference_prompts(prefix_content, suffix_content, prefix_style,
                      suffix_style, ctx, *, n_ctx, style_position=1):
    """Pure-JAX reference mirroring the PyTorch forward."""
    n_cls = prefix_content.shape[0]
    ctx_exp = jnp.broadcast_to(ctx[None, :, :], (n_cls,) + ctx.shape)
    parts = []
    for i in range(n_cls):
        prompt = jnp.concatenate(
            [
                prefix_content[i:i + 1, :, :],
                suffix_content[i:i + 1, :style_position, :],
                ctx_exp[i:i + 1, :, :],
                suffix_content[i:i + 1, style_position:, :],
            ],
            axis=1,
        )
        parts.append(prompt)
    prompts_content = jnp.concatenate(parts, axis=0)

    prompts = jnp.concatenate(
        [prefix_style[0, :, :], ctx_exp[0, :, :], suffix_style[0, :, :]], axis=0
    )[None, :, :]
    return prompts, prompts_content


if __name__ == "__main__":
    # Small, CLIP-like synthetic shapes:
    #   n_cls classnames, context length n_ctx=1, total tokenized seq length 8.
    #   ctx_dim = 128 so the output last dim is lane-dense (real CLIP: 512/768).
    n_cls = 8
    n_ctx = 1
    seq = 8
    ctx_dim = 128
    l_suf = seq - 1 - n_ctx  # = 6, suffix = class/EOS/pad token embeddings
    dtype = jnp.float32

    key = jax.random.PRNGKey(0)
    k_ctx, k_pc, k_sc, k_ps, k_ss = jax.random.split(key, 5)

    # nn.init.normal_(ctx_vectors, std=0.02)
    ctx = (0.02 * jax.random.normal(k_ctx, (n_ctx, ctx_dim))).astype(dtype)
    # Synthetic stand-ins for the frozen CLIP token embeddings (buffers).
    # TODO(synk): real CLIP tokenizer + token_embedding lookup (init-time) not
    # reproduced; buffers are synthesized deterministically with matching shapes.
    token_prefix_content = jax.random.normal(k_pc, (n_cls, 1, ctx_dim), dtype)
    token_suffix_content = jax.random.normal(k_sc, (n_cls, l_suf, ctx_dim), dtype)
    token_prefix_style = jax.random.normal(k_ps, (1, 1, ctx_dim), dtype)
    token_suffix_style = jax.random.normal(k_ss, (1, l_suf, ctx_dim), dtype)

    prompts_style, prompts_content = build_prompts(
        token_prefix_content, token_suffix_content,
        token_prefix_style, token_suffix_style, ctx, n_ctx=n_ctx)
    jax.block_until_ready((prompts_style, prompts_content))

    ref_style, ref_content = reference_prompts(
        token_prefix_content, token_suffix_content,
        token_prefix_style, token_suffix_style, ctx, n_ctx=n_ctx)

    assert prompts_style.shape == (1, seq, ctx_dim)
    assert prompts_content.shape == (n_cls, seq, ctx_dim)
    assert jnp.allclose(prompts_style, ref_style)
    assert jnp.allclose(prompts_content, ref_content)

    print("KERNEL_OK")
</pallas_src>

<mosaic_0001>
module attributes {stable_mosaic.version = 11 : i64} {
  func.func @content_kernel(%arg0: i32, %arg1: memref<4x1x128xf32, #tpu.memory_space<vmem>>, %arg2: memref<4x6x128xf32, #tpu.memory_space<vmem>>, %arg3: memref<1x128xf32, #tpu.memory_space<vmem>>, %arg4: memref<4x8x128xf32, #tpu.memory_space<vmem>>) attributes {dimension_semantics = [#tpu.dimension_semantics<parallel>], iteration_bounds = array<i64: 2>, scalar_prefetch = 0 : i64, scratch_operands = 0 : i64, tpu.core_type = #tpu.core_type<tc>, window_params = [{transform_indices = @transform_0, window_bounds = array<i64: 4, 1, 128>}, {transform_indices = @transform_1, window_bounds = array<i64: 4, 6, 128>}, {pipeline_mode = #tpu.pipeline_mode<synchronous>, transform_indices = @transform_2, window_bounds = array<i64: 1, 128>}, {transform_indices = @transform_3, window_bounds = array<i64: 4, 8, 128>}]} {
    %c0 = arith.constant 0 : index
    %c0_0 = arith.constant 0 : index
    %c0_1 = arith.constant 0 : index
    %0 = vector.load %arg2[%c0, %c0_0, %c0_1] : memref<4x6x128xf32, #tpu.memory_space<vmem>>, vector<4x6x128xf32>
    %c0_2 = arith.constant 0 : index
    %c0_3 = arith.constant 0 : index
    %1 = vector.load %arg3[%c0_2, %c0_3] : memref<1x128xf32, #tpu.memory_space<vmem>>, vector<1x128xf32>
    %2 = vector.shape_cast %1 : vector<1x128xf32> to vector<1x1x128xf32>
    %3 = vector.shape_cast %2 : vector<1x1x128xf32> to vector<1x1x128xf32>
    %4 = vector.broadcast %3 : vector<1x1x128xf32> to vector<4x1x128xf32>
    %c0_4 = arith.constant 0 : index
    %c0_5 = arith.constant 0 : index
    %c0_6 = arith.constant 0 : index
    %5 = vector.load %arg1[%c0_4, %c0_5, %c0_6] : memref<4x1x128xf32, #tpu.memory_space<vmem>>, vector<4x1x128xf32>
    %6 = vector.extract_strided_slice %0 {offsets = [0, 0, 0], sizes = [4, 1, 128], strides = [1, 1, 1]} : vector<4x6x128xf32> to vector<4x1x128xf32>
    %7 = vector.extract_strided_slice %0 {offsets = [0, 1, 0], sizes = [4, 5, 128], strides = [1, 1, 1]} : vector<4x6x128xf32> to vector<4x5x128xf32>
    %8 = tpu.concatenate %5, %6, %4, %7 in 1 : vector<4x1x128xf32>, vector<4x1x128xf32>, vector<4x1x128xf32>, vector<4x5x128xf32> -> vector<4x8x128xf32>
    %c0_7 = arith.constant 0 : index
    %c0_8 = arith.constant 0 : index
    %c0_9 = arith.constant 0 : index
    %9 = vector.load %arg4[%c0_7, %c0_8, %c0_9] : memref<4x8x128xf32, #tpu.memory_space<vmem>>, vector<4x8x128xf32>
    tpu.vector_store %arg4[%c0_7, %c0_8, %c0_9], %8 {strides = array<i32>} : memref<4x8x128xf32, #tpu.memory_space<vmem>>, vector<4x8x128xf32>,
    return
  }
  func.func @transform_0(%arg0: i32) -> (i32, i32, i32) {
    %c0_i32 = arith.constant 0 : i32
    %c0_i32_0 = arith.constant 0 : i32
    %c0_i32_1 = arith.constant 0 : i32
    return %arg0, %c0_i32, %c0_i32_0 : i32, i32, i32
  }
  func.func @transform_1(%arg0: i32) -> (i32, i32, i32) {
    %c0_i32 = arith.constant 0 : i32
    %c0_i32_0 = arith.constant 0 : i32
    %c0_i32_1 = arith.constant 0 : i32
    return %arg0, %c0_i32, %c0_i32_0 : i32, i32, i32
  }
  func.func @transform_2(%arg0: i32) -> (i32, i32) {
    %c0_i32 = arith.constant 0 : i32
    %c0_i32_0 = arith.constant 0 : i32
    %c0_i32_1 = arith.constant 0 : i32
    return %c0_i32, %c0_i32_0 : i32, i32
  }
  func.func @transform_3(%arg0: i32) -> (i32, i32, i32) {
    %c0_i32 = arith.constant 0 : i32
    %c0_i32_0 = arith.constant 0 : i32
    %c0_i32_1 = arith.constant 0 : i32
    return %arg0, %c0_i32, %c0_i32_0 : i32, i32, i32
  }
}

</mosaic_0001>

<llo_original>
// kernel: tpu_custom_call.1
$region0: #{tpu_custom_call.1}
  #allocation0 [shape = 'u32[]', space=smem, size = 0x4, offset = 0x4, fixed_abs, tag = 'smem constant byte address 0x4 - core index']
  #allocation1 [shape = 'u32[144,128]{1,0:T(1,128)}', space=vmem, size = 0x12000, scoped, tag = 'internal scratch']
  %s0 = inlined_call_operand.vmem [shape: f32[8,1,128], index: 0, kind: input, shape index: {}]
  %s1 = inlined_call_operand.vmem [shape: f32[8,6,128], index: 1, kind: input, shape index: {}]
  %s2 = inlined_call_operand.vmem [shape: f32[1,128], index: 2, kind: input, shape index: {}]
  %s3 = inlined_call_operand.hbm [shape: f32[8,8,128], index: 3, kind: output, shape index: {}]
  %s4 = sld [smem:[#allocation0]]
  $region45: #{tpu_custom_call.1} parent=0
    _
  %s6 = ssub.s32 1, %s4
  %s7 = scalar_select 0, %s6, %s4
  $region1: #{tpu_custom_call.1} parent=0
    #allocation2 [shape = 'u8[32768]{0}', space=vmem, size = 0x8000, scoped, tag = 'output window, operand 0']
    #allocation3 [shape = 's32[2]{0}', space=sflag, size = 0x8, scoped, tag = 'scoped memory for tpu_custom_call.1']
    %8 = vsyncpa [#allocation3], 0
    %s9 = scalar_lea.sflag [#allocation3], 1
    %10 = vsyncpa %s9, 0
    loop: start=0, step=1, limit=4
    $region2: #{tpu_custom_call.1} parent=1 // loop_pre_header
      _
    $region3: #{tpu_custom_call.1} parent=1 // loop_header
      %s12 = sphi 0, %s16
      %p13 = scmp.ge.s32.totalorder %s12, 4
      %s22 = sphi 0, %s24
      %s25 = sphi 0, %s22
      %s26 = sphi 0, %s25
      %s42 = sphi 0, %s26
      %s48 = sphi 0, %s50
      %s51 = sphi 0, %s48
      %s52 = sphi 0, %s51
      %s68 = sphi 0, %s52
      %s72 = sphi 0, %s72
      %s74 = sphi 0, %s72
      %s75 = sphi 0, %s74
      %s89 = sphi 0, %s75
      %s95 = sphi 0, %s97
      %s98 = sphi 0, %s95
      %s99 = sphi 0, %s98
      %s115 = sphi 0, %s99
    $region4: #{tpu_custom_call.1} parent=1 // loop_header_branch
      %15 = sbr.rel (%p13) target = $region8
    $region5: #{tpu_custom_call.1} parent=1 // loop_body
      %s17 = ssub.s32 %s12, 1
      %s18 = ssub.s32 %s12, 2
      %s19 = sadd.s32 %s12, 1
      %s20 = ssub.s32 %s12, %s19
      %p21 = scmp.eq.s32.totalorder %s20, 0
      %s23 = sadd.s32 %s22, 1
      %s24 = scalar_select %p21, %s22, %s23
      %p27 = pneg %p21
      %p28 = scmp.eq.s32.totalorder %s12, 1
      %p29 = por %p27, %p28
      %p30 = scmp.ne.s32.totalorder %s22, %s25
      %p31 = scmp.eq.s32.totalorder %s12, 0
      %p32 = por %p30, %p31
      %p33 = scmp.ne.s32.totalorder %s22, %s25
      %p34 = scmp.eq.s32.totalorder %s17, 1
      %p35 = por %p33, %p34
      %p36 = scmp.ne.s32.totalorder %s25, %s26
      %p37 = scmp.eq.s32.totalorder %s17, 0
      %p38 = por %p36, %p37
      %p39 = scmp.ne.s32.totalorder %s25, %s26
      %p40 = scmp.eq.s32.totalorder %s18, 1
      %p41 = por %p39, %p40
      %p43 = scmp.ne.s32.totalorder %s26, %s42
      %p44 = scmp.eq.s32.totalorder %s18, 0
      %p45 = por %p43, %p44
      %s46 = ssub.s32 %s12, %s19
      %p47 = scmp.eq.s32.totalorder %s46, 0
      %s49 = sadd.s32 %s48, 1
      %s50 = scalar_select %p47, %s48, %s49
      %p53 = pneg %p47
      %p54 = scmp.eq.s32.totalorder %s12, 1
      %p55 = por %p53, %p54
      %p56 = scmp.ne.s32.totalorder %s48, %s51
      %p57 = scmp.eq.s32.totalorder %s12, 0
      %p58 = por %p56, %p57
      %p59 = scmp.ne.s32.totalorder %s48, %s51
      %p60 = scmp.eq.s32.totalorder %s17, 1
      %p61 = por %p59, %p60
      %p62 = scmp.ne.s32.totalorder %s51, %s52
      %p63 = scmp.eq.s32.totalorder %s17, 0
      %p64 = por %p62, %p63
      %p65 = scmp.ne.s32.totalorder %s51, %s52
      %p66 = scmp.eq.s32.totalorder %s18, 1
      %p67 = por %p65, %p66
      %p69 = scmp.ne.s32.totalorder %s52, %s68
      %p70 = scmp.eq.s32.totalorder %s18, 0
      %p71 = por %p69, %p70
      %s73 = sadd.s32 %s72, 1
      %p76 = scmp.eq.s32.totalorder %s12, 1
      %p77 = scmp.ne.s32.totalorder %s72, %s74
      %p78 = scmp.eq.s32.totalorder %s12, 0
      %p79 = por %p77, %p78
      %p80 = scmp.ne.s32.totalorder %s72, %s74
      %p81 = scmp.eq.s32.totalorder %s17, 1
      %p82 = por %p80, %p81
      %p83 = scmp.ne.s32.totalorder %s74, %s75
      %p84 = scmp.eq.s32.totalorder %s17, 0
      %p85 = por %p83, %p84
      %p86 = scmp.ne.s32.totalorder %s74, %s75
      %p87 = scmp.eq.s32.totalorder %s18, 1
      %p88 = por %p86, %p87
      %p90 = scmp.ne.s32.totalorder %s75, %s89
      %p91 = scmp.eq.s32.totalorder %s18, 0
      %p92 = por %p90, %p91
      %s93 = ssub.s32 %s12, %s19
      %p94 = scmp.eq.s32.totalorder %s93, 0
      %s96 = sadd.s32 %s95, 1
      %s97 = scalar_select %p94, %s95, %s96
      %p100 = pneg %p94
      %p101 = scmp.eq.s32.totalorder %s12, 1
      %p102 = por %p100, %p101
      %p103 = scmp.ne.s32.totalorder %s95, %s98
      %p104 = scmp.eq.s32.totalorder %s12, 0
      %p105 = por %p103, %p104
      %p106 = scmp.ne.s32.totalorder %s95, %s98
      %p107 = scmp.eq.s32.totalorder %s17, 1
      %p108 = por %p106, %p107
      %p109 = scmp.ne.s32.totalorder %s98, %s99
      %p110 = scmp.eq.s32.totalorder %s17, 0
      %p111 = por %p109, %p110
      %p112 = scmp.ne.s32.totalorder %s98, %s99
      %p113 = scmp.eq.s32.totalorder %s18, 1
      %p114 = por %p112, %p113
      %p116 = scmp.ne.s32.totalorder %s99, %s115
      %p117 = scmp.eq.s32.totalorder %s18, 0
      %p118 = por %p116, %p117
      %p119 = scmp.le.s32.totalorder 1, %s12
      %p120 = scmp.lt.s32.totalorder %s12, 3
      %p121 = pnand %p119, %p120
      %p122 = pneg %p121
      // Predicated region
      $region9: #{tpu_custom_call.1} parent=5 // pred_check
        _
      $region10: #{tpu_custom_call.1} parent=5 // pred_check_branch
        %124 = sbr.rel (%p121) target = $region12
      $region11: #{tpu_custom_call.1} parent=5 // pred_region
        %s125 = ssub.s32 %s12, 1
        // Predicated region
        $region13: #{tpu_custom_call.1} parent=11 // pred_check
          %p126 = pneg %p85
        $region14: #{tpu_custom_call.1} parent=11 // pred_check_branch
          %128 = sbr.rel (%p126) target = $region16
        $region15: #{tpu_custom_call.1} parent=11 // pred_region
          _
        $region16: #{tpu_custom_call.1} parent=11 // pred_fallthru
          _
      $region12: #{tpu_custom_call.1} parent=5 // pred_fallthru
        _
      %p129 = scmp.lt.s32.totalorder %s12, 2
      // Predicated region
      $region17: #{tpu_custom_call.1} parent=5 // pred_check
        %p130 = pneg %p129
      $region18: #{tpu_custom_call.1} parent=5 // pred_check_branch
        %132 = sbr.rel (%p130) target = $region20
      $region19: #{tpu_custom_call.1} parent=5 // pred_region
        // Predicated region
        $region21: #{tpu_custom_call.1} parent=19 // pred_check
          %p133 = pneg %p32
        $region22: #{tpu_custom_call.1} parent=19 // pred_check_branch
          %135 = sbr.rel (%p133) target = $region24
        $region23: #{tpu_custom_call.1} parent=19 // pred_region
          %s136 = smul.u32 4, %s12
          %p137 = scmp.lt.s32.totalorder %s136, 7
          %s138 = scalar_select %p137, %s136, 7
          %s139 = scalar_lea.vmem %s0, %s138
          %s140 = smul.u32 4, %s12
        $region24: #{tpu_custom_call.1} parent=19 // pred_fallthru
          _
        // Predicated region
        $region25: #{tpu_custom_call.1} parent=19 // pred_check
          %p141 = pneg %p58
        $region26: #{tpu_custom_call.1} parent=19 // pred_check_branch
          %143 = sbr.rel (%p141) target = $region28
        $region27: #{tpu_custom_call.1} parent=19 // pred_region
          %s144 = smul.u32 4, %s12
          %p145 = scmp.lt.s32.totalorder %s144, 7
          %s146 = scalar_select %p145, %s144, 7
          %s147 = smul.addr %s146, 8
          %s148 = scalar_lea.vmem %s1, %s147
          %s149 = smul.u32 4, %s12
        $region28: #{tpu_custom_call.1} parent=19 // pred_fallthru
          _
      $region20: #{tpu_custom_call.1} parent=5 // pred_fallthru
        _
      %p150 = scmp.le.s32.totalorder 1, %s12
      %p151 = scmp.lt.s32.totalorder %s12, 3
      %p152 = pnand %p150, %p151
      %p153 = pneg %p152
      // Predicated region
      $region29: #{tpu_custom_call.1} parent=5 // pred_check
        _
      $region30: #{tpu_custom_call.1} parent=5 // pred_check_branch
        %155 = sbr.rel (%p152) target = $region32
      $region31: #{tpu_custom_call.1} parent=5 // pred_region
        %s156 = ssub.s32 %s12, 1
        %s157 = smul.u32 4, %s17
        %p158 = scmp.lt.s32.totalorder %s157, 7
        %s159 = scalar_select %p158, %s157, 7
        %s160 = scalar_lea.vmem %s0, %s159
        %p161 = pneg %p38
        %p162 = pneg %p35
        %s163 = smul.u32 4, %s17
        %p164 = scmp.lt.s32.totalorder %s163, 7
        %s165 = scalar_select %p164, %s163, 7
        %s166 = smul.addr %s165, 8
        %s167 = scalar_lea.vmem %s1, %s166
        %p168 = pneg %p64
        %p169 = pneg %p61
        %p170 = pneg %p85
        %p171 = pneg %p82
        %p172 = pneg %p111
        %p173 = pneg %p108
        %s174 = sand.u32 %s98, 1
        %s175 = scalar_lea.sflag [#allocation3], %s174
        %s176 = sand.u32 %s98, 1
        %s177 = smul.addr %s176, 32
        %s178 = scalar_lea.vmem [#allocation2], %s177
        %s179 = smul.u32 4, %s17
        %p180 = scmp.lt.s32.totalorder %s179, 7
        %s181 = scalar_select %p180, %s179, 7
        %s182 = scalar_lea.vmem %s0, %s181
        %s183 = smul.u32 4, %s17
        %s184 = smul.u32 4, %s17
        %p185 = scmp.lt.s32.totalorder %s184, 7
        %s186 = scalar_select %p185, %s184, 7
        %s187 = smul.addr %s186, 8
        %s188 = scalar_lea.vmem %s1, %s187
        %s189 = smul.u32 4, %s17
        %s190 = smul.u32 4, %s17
        %v191 = vld [vmem:[%s188] sm:$0x3f]
        %v192 = vld [vmem:[%s188 + $0x8] sm:$0x3f]
        %v193 = vld [vmem:[%s188 + $0x10] sm:$0x3f]
        %v194 = vld [vmem:[%s188 + $0x18] sm:$0x3f]
        %v195 = vld [vmem:[%s2] sm:$0x1]
        %v196 = vld [vmem:[%s182] sm:$0x1]
        %v197 = vld [vmem:[%s182 + $0x1] sm:$0x1]
        %v198 = vld [vmem:[%s182 + $0x2] sm:$0x1]
        %v199 = vld [vmem:[%s182 + $0x3] sm:$0x1]
        %v204 = vrot.slane %v191, 7
        %v205 = vrot.slane %v192, 7
        %v206 = vrot.slane %v193, 7
        %v207 = vrot.slane %v194, 7
        %v213 = vlaneseq
        %v214 = vshrl.u32 %v213, 7
        %v215 = vsub.s32 0, %v214
        %v216 = vrot.slane %v195, %v215
        %v218 = vrot.slane %v191, 6
        %v219 = vrot.slane %v192, 6
        %v220 = vrot.slane %v193, 6
        %v221 = vrot.slane %v194, 6
        %vm226 = vcmask 1040384
        %v227 = vsel %vm226, %v196, %v204
        %v228 = vsel %vm226, %v197, %v205
        %v229 = vsel %vm226, %v198, %v206
        %v230 = vsel %vm226, %v199, %v207
        %vm231 = vcmask 1041408
        %v232 = vsel %vm231, %v227, %v216
        %v233 = vsel %vm231, %v228, %v216
        %v234 = vsel %vm231, %v229, %v216
        %v235 = vsel %vm231, %v230, %v216
        %vm236 = vcmask 1042432
        %v237 = vsel %vm236, %v232, %v218
        %v238 = vsel %vm236, %v233, %v219
        %v239 = vsel %vm236, %v234, %v220
        %v240 = vsel %vm236, %v235, %v221
        %241 = vst [vmem:[%s178] sm:$0xff] %v237
        %242 = vst [vmem:[%s178 + $0x8] sm:$0xff] %v238
        %243 = vst [vmem:[%s178 + $0x10] sm:$0xff] %v239
        %244 = vst [vmem:[%s178 + $0x18] sm:$0xff] %v240
        %s245 = sand.u32 %s98, 1
        %s246 = scalar_lea.sflag [#allocation3], %s245
        %s247 = sand.u32 %s98, 1
        %s248 = smul.addr %s247, 32
        %s249 = scalar_lea.vmem [#allocation2], %s248
        // Predicated region
        $region33: #{tpu_custom_call.1} parent=31 // pred_check
          %p250 = pneg %p108
        $region34: #{tpu_custom_call.1} parent=31 // pred_check_branch
          %252 = sbr.rel (%p250) target = $region36
        $region35: #{tpu_custom_call.1} parent=31 // pred_region
          %s253 = smul.u32 4, %s17
          %s255 = ssub.s32 512, 512
          %256 = vsyncadd %s246, %s255
          %s257 = smul.addr %s253, 128
          %s258 = scalar_lea.hbm %s3, %s257
          %s259 = sshll.u32 %s249, 4
          %s260 = int_to_ptr.vmem [resolvable:$true] %s259
          %265 = dma.vmem_to_hbm [thread:$0]  %s260, 512, %s258, %s246, 128, 128, 8
        $region36: #{tpu_custom_call.1} parent=31 // pred_fallthru
          _
      $region32: #{tpu_custom_call.1} parent=5 // pred_fallthru
        _
      %p266 = scmp.le.s32.totalorder 2, %s12
      // Predicated region
      $region37: #{tpu_custom_call.1} parent=5 // pred_check
        %p267 = pneg %p266
      $region38: #{tpu_custom_call.1} parent=5 // pred_check_branch
        %269 = sbr.rel (%p267) target = $region40
      $region39: #{tpu_custom_call.1} parent=5 // pred_region
        %s270 = ssub.s32 %s12, 2
        // Predicated region
        $region41: #{tpu_custom_call.1} parent=39 // pred_check
          %p271 = pneg %p114
        $region42: #{tpu_custom_call.1} parent=39 // pred_check_branch
          %273 = sbr.rel (%p271) target = $region44
        $region43: #{tpu_custom_call.1} parent=39 // pred_region
          %s274 = sand.u32 %s99, 1
          %s275 = scalar_lea.sflag [#allocation3], %s274
          %s276 = sand.u32 %s99, 1
          %s277 = smul.addr %s276, 32
          %s278 = scalar_lea.vmem [#allocation2], %s277
          %279 = dma.done %s275, 512
        $region44: #{tpu_custom_call.1} parent=39 // pred_fallthru
          _
      $region40: #{tpu_custom_call.1} parent=5 // pred_fallthru
        _
    $region6: #{tpu_custom_call.1} parent=1 // loop_footer
      %s16 = sadd.s32 1, %s12
    $region7: #{tpu_custom_call.1} parent=1 // loop_footer_branch
      %11 = sbr.rel target = $region3
    $region8: #{tpu_custom_call.1} parent=1 // loop_exit
      _
    %280 = vsyncpa [#allocation3], 1
    %s281 = scalar_lea.sflag [#allocation3], 1
    %282 = vsyncpa %s281, 1

</llo_original>
